<compile_context>
chip_gen: v7x
topology: tpu7x:2x2x1
jax: 0.10.0
libtpu: 0.0.40
codegen_flags: <defaults>
</compile_context>

<pallas_src>
import functools
import math

import jax
import jax.numpy as jnp
from jax.experimental import pallas as pl
from jax.experimental.pallas import tpu as pltpu


# ---------------------------------------------------------------------------
# Fused Pallas kernel: per-batch-sample Gram-matrix distillation losses
# ---------------------------------------------------------------------------
def _fused_distill_kernel(*refs, use_attn, use_cls):
    """One grid step == one batch sample.

    Accumulates   cls_loss + 200 * attn_loss   into the resident output block
    across the batch grid axis and multiplies by distill_weight on the last
    step.  SSE is computed as ||T||^2 + ||S||^2 - 2<T,S> with the cross terms
    on the MXU.
    """
    idx = 0
    if use_attn:
        t_attn_ref, s_attn_ref = refs[idx], refs[idx + 1]   # (tn,Ht,NN), (sn,Hs,NN)
        idx += 2
    if use_cls:
        t_cls_ref, w_ref, s_cls_ref = refs[idx], refs[idx + 1], refs[idx + 2]
        idx += 3
    dw_ref, out_ref = refs[idx], refs[idx + 1]

    b = pl.program_id(0)
    nb = pl.num_programs(0)

    @pl.when(b == 0)
    def _init():
        out_ref[...] = jnp.zeros_like(out_ref)

    loss = jnp.zeros(out_ref.shape, jnp.float32)
    nt = (((1,), (1,)), ((), ()))   # contract last dims of both: A @ B^T on MXU

    if use_attn:
        t = t_attn_ref[...].astype(jnp.float32)              # (tn, Ht, NN)
        s = s_attn_ref[...].astype(jnp.float32)              # (sn, Hs, NN)
        # torch.mean(attn, dim=1): head mean, once per tensor, lane-dense NN.
        t_avg = jnp.sum(t, axis=1) * (1.0 / float(t.shape[1]))   # (tn, NN)
        s_avg = jnp.sum(s, axis=1) * (1.0 / float(s.shape[1]))   # (sn, NN)
        gram = jax.lax.dot_general(t_avg, s_avg, nt,
                                   preferred_element_type=jnp.float32)   # (tn, sn)
        t_sq = jnp.sum(t_avg * t_avg, axis=1, keepdims=True)             # (tn, 1)
        ones_nn = jnp.ones((1, s_avg.shape[-1]), jnp.float32)
        s_sq = jax.lax.dot_general(ones_nn, s_avg * s_avg, nt,
                                   preferred_element_type=jnp.float32)   # (1, sn)
        loss = loss + 200.0 * (t_sq + s_sq - 2.0 * gram)

    if use_cls:
        tc = t_cls_ref[...].astype(jnp.float32)               # (tn, Dt)
        sc = s_cls_ref[...].astype(jnp.float32)               # (sn, Ds)
        # F.interpolate(mode='linear') == matmul with precomputed weights;
        # computed once per batch step (not per (i, j) pair).
        t_int = jnp.dot(tc, w_ref[...], preferred_element_type=jnp.float32)  # (tn, Ds)
        gram_c = jax.lax.dot_general(t_int, sc, nt,
                                     preferred_element_type=jnp.float32)     # (tn, sn)
        t_sq_c = jnp.sum(t_int * t_int, axis=1, keepdims=True)               # (tn, 1)
        ones_d = jnp.ones((1, sc.shape[-1]), jnp.float32)
        s_sq_c = jax.lax.dot_general(ones_d, sc * sc, nt,
                                     preferred_element_type=jnp.float32)     # (1, sn)
        loss = loss + (t_sq_c + s_sq_c - 2.0 * gram_c)

    # Output block is resident across the batch (reduction) grid axis.
    out_ref[...] += loss

    @pl.when(b == nb - 1)
    def _final():
        out_ref[...] = dw_ref[...] * out_ref[...]


# ---------------------------------------------------------------------------
# Wrapper: layout plumbing + pallas_call
# ---------------------------------------------------------------------------
def linear_interp_matrix(in_size, out_size):
    """W s.t. x @ W == F.interpolate(x, scale_factor=out/in, mode='linear',
    align_corners=False) along the last dim."""
    scale = in_size / out_size
    o = jnp.arange(out_size, dtype=jnp.float32)
    src = (o + 0.5) * scale - 0.5
    src = jnp.clip(src, 0.0, float(in_size - 1))
    lo = jnp.floor(src).astype(jnp.int32)
    hi = jnp.minimum(lo + 1, in_size - 1)
    w_hi = src - lo.astype(jnp.float32)
    w_lo = 1.0 - w_hi
    cols = jnp.arange(out_size)
    w = jnp.zeros((in_size, out_size), jnp.float32)
    w = w.at[lo, cols].add(w_lo)
    w = w.at[hi, cols].add(w_hi)
    return w


def fused_distill_loss(distill_weight, *, t_attn=None, s_attn=None,
                       t_cls=None, s_cls=None):
    """distill_weight * (cls_loss_matrix + 200 * attn_loss_matrix), fused."""
    use_attn = t_attn is not None
    use_cls = t_cls is not None
    tn, sn = distill_weight.shape
    dw = distill_weight.astype(jnp.float32)

    if not (use_attn or use_cls):
        return jnp.zeros((tn, sn), jnp.float32)

    args, in_specs = [], []
    batch = None
    if use_attn:
        tnp, b, ht, n, _ = t_attn.shape
        snp, _, hs, _, _ = s_attn.shape
        batch = b
        # [parts,B,H,N,N] -> [B,parts,H,N*N]: batch leading (grid axis),
        # trailing N*N lane-dense.
        t_a = jnp.transpose(t_attn, (1, 0, 2, 3, 4)).reshape(b, tnp, ht, n * n)
        s_a = jnp.transpose(s_attn, (1, 0, 2, 3, 4)).reshape(b, snp, hs, n * n)
        args += [t_a, s_a]
        in_specs += [
            pl.BlockSpec((pl.Squeezed(), tnp, ht, n * n), lambda bb: (bb, 0, 0, 0)),
            pl.BlockSpec((pl.Squeezed(), snp, hs, n * n), lambda bb: (bb, 0, 0, 0)),
        ]
    if use_cls:
        tnp, b, dt = t_cls.shape
        snp, _, ds = s_cls.shape
        batch = b
        w_interp = linear_interp_matrix(dt, ds)
        t_c = jnp.transpose(t_cls, (1, 0, 2))   # (B, tn, Dt)
        s_c = jnp.transpose(s_cls, (1, 0, 2))   # (B, sn, Ds)
        args += [t_c, w_interp, s_c]
        in_specs += [
            pl.BlockSpec((pl.Squeezed(), tnp, dt), lambda bb: (bb, 0, 0)),
            pl.BlockSpec((dt, ds), lambda bb: (0, 0)),
            pl.BlockSpec((pl.Squeezed(), snp, ds), lambda bb: (bb, 0, 0)),
        ]
    args.append(dw)
    in_specs.append(pl.BlockSpec((tn, sn), lambda bb: (0, 0)))

    kernel = functools.partial(_fused_distill_kernel,
                               use_attn=use_attn, use_cls=use_cls)
    return pl.pallas_call(
        kernel,
        out_shape=jax.ShapeDtypeStruct((tn, sn), jnp.float32),
        grid=(batch,),
        in_specs=in_specs,
        out_specs=pl.BlockSpec((tn, sn), lambda bb: (0, 0)),
        # Batch axis is a reduction onto the resident output block.
        compiler_params=pltpu.CompilerParams(
            dimension_semantics=("arbitrary",)),
    )(*args)


# ---------------------------------------------------------------------------
# Synthetic t_net / s_net (plain-JAX glue standing in for the external ViTs)
# ---------------------------------------------------------------------------
def init_synth_vit(key, n_parts, n_heads, dim, patch_feat):
    k_e, k_c, k_q, k_k, k_cls = jax.random.split(key, 5)
    return dict(
        n_heads=n_heads,
        w_embed=0.05 * jax.random.normal(k_e, (patch_feat, dim), jnp.float32),
        cls_init=0.05 * jax.random.normal(k_c, (dim,), jnp.float32),
        wq=(1.0 / math.sqrt(dim)) * jax.random.normal(k_q, (n_parts, dim, dim), jnp.float32),
        wk=(1.0 / math.sqrt(dim)) * jax.random.normal(k_k, (n_parts, dim, dim), jnp.float32),
        wc=(1.0 / math.sqrt(dim)) * jax.random.normal(k_cls, (n_parts, dim, dim), jnp.float32),
    )


def synth_vit_features(x, params, patch=4):
    """Deterministic stand-in for .get_all_selfattention / .extract_feature.
    Returns (attn_maps [parts,B,H,N,N], cls_tokens [parts,B,D])."""
    b, c, h, w = x.shape
    nh, nw = h // patch, w // patch
    patches = x.reshape(b, c, nh, patch, nw, patch)
    patches = patches.transpose(0, 2, 4, 1, 3, 5).reshape(b, nh * nw, c * patch * patch)
    tokens = jnp.einsum('bpe,ed->bpd', patches, params['w_embed'])
    dim = params['w_embed'].shape[1]
    cls = jnp.broadcast_to(params['cls_init'], (b, 1, dim))
    tokens = jnp.concatenate([cls, tokens], axis=1)            # (B, N, D)
    n = tokens.shape[1]
    heads = params['n_heads']
    dh = dim // heads
    attns, clss = [], []
    for p in range(params['wq'].shape[0]):
        q = (tokens @ params['wq'][p]).reshape(b, n, heads, dh).transpose(0, 2, 1, 3)
        k = (tokens @ params['wk'][p]).reshape(b, n, heads, dh).transpose(0, 2, 1, 3)
        logits = jnp.einsum('bhnd,bhmd->bhnm', q, k) / math.sqrt(dh)
        attns.append(jax.nn.softmax(logits, axis=-1))
        clss.append(tokens[:, 0, :] @ params['wc'][p])
    return jnp.stack(attns), jnp.stack(clss)


# ---------------------------------------------------------------------------
# Vit_multilayer_Distiller.forward
# ---------------------------------------------------------------------------
def vit_multilayer_distiller_forward(x, distill_weight, distill_ffn, distill_token,
                                     number_block_per_part,
                                     descendant_number_block_per_part,
                                     t_params, s_params):
    # TODO(synk): t_net / s_net are external backbones; the part counts implied
    # by number_block_per_part / descendant_number_block_per_part are baked
    # into the synthetic params built in __main__.
    del number_block_per_part, descendant_number_block_per_part
    distill_str = distill_token.split('+')
    use_cls = ('ffn' in distill_str) and (distill_ffn == 'cls')
    use_attn = 'attn' in distill_str

    t_attn = s_attn = t_cls = s_cls = None
    if use_cls:
        _, t_cls = synth_vit_features(x, t_params)      # extract_feature (cls)
        _, s_cls = synth_vit_features(x, s_params)
    if use_attn:
        t_attn, _ = synth_vit_features(x, t_params)     # get_all_selfattention
        s_attn, _ = synth_vit_features(x, s_params)

    return fused_distill_loss(distill_weight, t_attn=t_attn, s_attn=s_attn,
                              t_cls=t_cls, s_cls=s_cls)


# ---------------------------------------------------------------------------
if __name__ == "__main__":
    root = jax.random.PRNGKey(0)
    kx, kt, ks, kw = jax.random.split(root, 4)

    B, C, H, W = 2, 4, 16, 16
    x = jax.random.normal(kx, (B, C, H, W), jnp.float32)

    number_block_per_part = [4, 4, 4]             # teacher: 3 parts, 4 heads, dim 48
    descendant_number_block_per_part = [6, 6]     # student: 2 parts, 2 heads, dim 32
    t_params = init_synth_vit(kt, n_parts=len(number_block_per_part),
                              n_heads=4, dim=48, patch_feat=C * 4 * 4)
    s_params = init_synth_vit(ks, n_parts=len(descendant_number_block_per_part),
                              n_heads=2, dim=32, patch_feat=C * 4 * 4)

    distill_weight = jax.random.uniform(
        kw, (len(number_block_per_part), len(descendant_number_block_per_part)),
        jnp.float32)

    out = vit_multilayer_distiller_forward(
        x, distill_weight, 'cls', 'ffn+attn',
        number_block_per_part, descendant_number_block_per_part,
        t_params, s_params)
    out = jax.block_until_ready(out)

    # pure-JAX reference check (direct diff-square formulation)
    t_attn, t_cls = synth_vit_features(x, t_params)
    s_attn, s_cls = synth_vit_features(x, s_params)
    w_interp = linear_interp_matrix(t_cls.shape[-1], s_cls.shape[-1])
    t_avg = jnp.mean(t_attn, axis=2)
    s_avg = jnp.mean(s_attn, axis=2)
    attn_ref = jnp.sum((s_avg[None, :] - t_avg[:, None]) ** 2, axis=(2, 3, 4))
    t_int = jnp.einsum('tbd,de->tbe', t_cls, w_interp)
    cls_ref = jnp.sum((s_cls[None, :] - t_int[:, None]) ** 2, axis=(2, 3))
    ref = distill_weight * (cls_ref + 200.0 * attn_ref)

    assert out.shape == distill_weight.shape
    assert bool(jnp.allclose(out, ref, rtol=2e-3, atol=1e-3)), (out, ref)
    print("KERNEL_OK")
</pallas_src>

<mosaic_0001>
module attributes {stable_mosaic.version = 11 : i64} {
  func.func @_fused_distill_kernel(%arg0: i32, %arg1: memref<1x3x4x289xf32, #tpu.memory_space<vmem>>, %arg2: memref<1x2x2x289xf32, #tpu.memory_space<vmem>>, %arg3: memref<1x3x48xf32, #tpu.memory_space<vmem>>, %arg4: memref<48x32xf32, #tpu.memory_space<vmem>>, %arg5: memref<1x2x32xf32, #tpu.memory_space<vmem>>, %arg6: memref<3x2xf32, #tpu.memory_space<vmem>>, %arg7: memref<3x2xf32, #tpu.memory_space<vmem>>) attributes {dimension_semantics = [#tpu.dimension_semantics<arbitrary>], iteration_bounds = array<i64: 2>, scalar_prefetch = 0 : i64, scratch_operands = 0 : i64, tpu.core_type = #tpu.core_type<tc>, window_params = [{transform_indices = @transform_0, window_bounds = array<i64: 1, 3, 4, 289>}, {transform_indices = @transform_1, window_bounds = array<i64: 1, 2, 2, 289>}, {transform_indices = @transform_2, window_bounds = array<i64: 1, 3, 48>}, {pipeline_mode = #tpu.pipeline_mode<synchronous>, transform_indices = @transform_3, window_bounds = array<i64: 48, 32>}, {transform_indices = @transform_4, window_bounds = array<i64: 1, 2, 32>}, {pipeline_mode = #tpu.pipeline_mode<synchronous>, transform_indices = @transform_5, window_bounds = array<i64: 3, 2>}, {pipeline_mode = #tpu.pipeline_mode<synchronous>, transform_indices = @transform_6, window_bounds = array<i64: 3, 2>}]} {
    %c0_i32 = arith.constant 0 : i32
    %0 = arith.cmpi eq, %arg0, %c0_i32 : i32
    %1 = arith.extui %0 : i1 to i32
    %c0_i32_0 = arith.constant 0 : i32
    %2 = arith.cmpi ne, %1, %c0_i32_0 : i32
    scf.if %2 {
      %cst_37 = arith.constant 0.000000e+00 : f32
      %56 = vector.broadcast %cst_37 : f32 to vector<3x2xf32>
      %c0_38 = arith.constant 0 : index
      %c0_39 = arith.constant 0 : index
      %57 = vector.load %arg7[%c0_38, %c0_39] : memref<3x2xf32, #tpu.memory_space<vmem>>, vector<3x2xf32>
      tpu.vector_store %arg7[%c0_38, %c0_39], %56 {strides = array<i32>} : memref<3x2xf32, #tpu.memory_space<vmem>>, vector<3x2xf32>,
    } else {
    }
    %cst = arith.constant 0.000000e+00 : f32
    %3 = vector.broadcast %cst : f32 to vector<3x2xf32>
    %c0 = arith.constant 0 : index
    %c0_1 = arith.constant 0 : index
    %c0_2 = arith.constant 0 : index
    %c0_3 = arith.constant 0 : index
    %4 = vector.load %arg1[%c0, %c0_1, %c0_2, %c0_3] : memref<1x3x4x289xf32, #tpu.memory_space<vmem>>, vector<1x3x4x289xf32>
    %5 = vector.shape_cast %4 : vector<1x3x4x289xf32> to vector<3x4x289xf32>
    %c0_4 = arith.constant 0 : index
    %c0_5 = arith.constant 0 : index
    %c0_6 = arith.constant 0 : index
    %c0_7 = arith.constant 0 : index
    %6 = vector.load %arg2[%c0_4, %c0_5, %c0_6, %c0_7] : memref<1x2x2x289xf32, #tpu.memory_space<vmem>>, vector<1x2x2x289xf32>
    %7 = vector.shape_cast %6 : vector<1x2x2x289xf32> to vector<2x2x289xf32>
    %cst_8 = arith.constant dense<0.000000e+00> : vector<3x289xf32>
    %8 = vector.multi_reduction <add>, %5, %cst_8 [1] : vector<3x4x289xf32> to vector<3x289xf32>
    %cst_9 = arith.constant 2.500000e-01 : f32
    %9 = vector.broadcast %cst_9 : f32 to vector<3x289xf32>
    %10 = arith.mulf %8, %9 : vector<3x289xf32>
    %cst_10 = arith.constant dense<0.000000e+00> : vector<2x289xf32>
    %11 = vector.multi_reduction <add>, %7, %cst_10 [1] : vector<2x2x289xf32> to vector<2x289xf32>
    %cst_11 = arith.constant 5.000000e-01 : f32
    %12 = vector.broadcast %cst_11 : f32 to vector<2x289xf32>
    %13 = arith.mulf %11, %12 : vector<2x289xf32>
    %cst_12 = arith.constant dense<0.000000e+00> : vector<3x2xf32>
    %14 = tpu.matmul %10, %13, %cst_12 {dimension_numbers = #tpu.dot_dimension_numbers<[1], [1], [0], [0], [0, 0, 1, 0], [], []>} : vector<3x289xf32>, vector<2x289xf32>, vector<3x2xf32> -> vector<3x2xf32>
    %15 = arith.mulf %10, %10 : vector<3x289xf32>
    %cst_13 = arith.constant dense<0.000000e+00> : vector<3xf32>
    %16 = vector.multi_reduction <add>, %15, %cst_13 [1] : vector<3x289xf32> to vector<3xf32>
    %17 = vector.shape_cast %16 : vector<3xf32> to vector<3x1xf32>
    %cst_14 = arith.constant 1.000000e+00 : f32
    %18 = vector.broadcast %cst_14 : f32 to vector<1x289xf32>
    %19 = arith.mulf %13, %13 : vector<2x289xf32>
    %cst_15 = arith.constant dense<0.000000e+00> : vector<1x2xf32>
    %20 = tpu.matmul %18, %19, %cst_15 {dimension_numbers = #tpu.dot_dimension_numbers<[1], [1], [0], [0], [0, 0, 1, 0], [], []>} : vector<1x289xf32>, vector<2x289xf32>, vector<1x2xf32> -> vector<1x2xf32>
    %21 = vector.broadcast %17 : vector<3x1xf32> to vector<3x2xf32>
    %22 = vector.broadcast %20 : vector<1x2xf32> to vector<3x2xf32>
    %23 = arith.addf %21, %22 : vector<3x2xf32>
    %cst_16 = arith.constant 2.000000e+00 : f32
    %24 = vector.broadcast %cst_16 : f32 to vector<3x2xf32>
    %25 = arith.mulf %24, %14 : vector<3x2xf32>
    %26 = arith.subf %23, %25 : vector<3x2xf32>
    %cst_17 = arith.constant 2.000000e+02 : f32
    %27 = vector.broadcast %cst_17 : f32 to vector<3x2xf32>
    %28 = arith.mulf %27, %26 : vector<3x2xf32>
    %29 = arith.addf %3, %28 : vector<3x2xf32>
    %c0_18 = arith.constant 0 : index
    %c0_19 = arith.constant 0 : index
    %c0_20 = arith.constant 0 : index
    %30 = vector.load %arg3[%c0_18, %c0_19, %c0_20] : memref<1x3x48xf32, #tpu.memory_space<vmem>>, vector<1x3x48xf32>
    %31 = vector.shape_cast %30 : vector<1x3x48xf32> to vector<3x48xf32>
    %c0_21 = arith.constant 0 : index
    %c0_22 = arith.constant 0 : index
    %c0_23 = arith.constant 0 : index
    %32 = vector.load %arg5[%c0_21, %c0_22, %c0_23] : memref<1x2x32xf32, #tpu.memory_space<vmem>>, vector<1x2x32xf32>
    %33 = vector.shape_cast %32 : vector<1x2x32xf32> to vector<2x32xf32>
    %c0_24 = arith.constant 0 : index
    %c0_25 = arith.constant 0 : index
    %34 = vector.load %arg4[%c0_24, %c0_25] : memref<48x32xf32, #tpu.memory_space<vmem>>, vector<48x32xf32>
    %cst_26 = arith.constant dense<0.000000e+00> : vector<3x32xf32>
    %35 = tpu.matmul %31, %34, %cst_26 {dimension_numbers = #tpu.dot_dimension_numbers<[1], [0], [0], [1], [0, 0, 1, 1], [], []>} : vector<3x48xf32>, vector<48x32xf32>, vector<3x32xf32> -> vector<3x32xf32>
    %cst_27 = arith.constant dense<0.000000e+00> : vector<3x2xf32>
    %36 = tpu.matmul %35, %33, %cst_27 {dimension_numbers = #tpu.dot_dimension_numbers<[1], [1], [0], [0], [0, 0, 1, 0], [], []>} : vector<3x32xf32>, vector<2x32xf32>, vector<3x2xf32> -> vector<3x2xf32>
    %37 = arith.mulf %35, %35 : vector<3x32xf32>
    %cst_28 = arith.constant dense<0.000000e+00> : vector<3xf32>
    %38 = vector.multi_reduction <add>, %37, %cst_28 [1] : vector<3x32xf32> to vector<3xf32>
    %39 = vector.shape_cast %38 : vector<3xf32> to vector<3x1xf32>
    %cst_29 = arith.constant 1.000000e+00 : f32
    %40 = vector.broadcast %cst_29 : f32 to vector<1x32xf32>
    %41 = arith.mulf %33, %33 : vector<2x32xf32>
    %cst_30 = arith.constant dense<0.000000e+00> : vector<1x2xf32>
    %42 = tpu.matmul %40, %41, %cst_30 {dimension_numbers = #tpu.dot_dimension_numbers<[1], [1], [0], [0], [0, 0, 1, 0], [], []>} : vector<1x32xf32>, vector<2x32xf32>, vector<1x2xf32> -> vector<1x2xf32>
    %43 = vector.broadcast %39 : vector<3x1xf32> to vector<3x2xf32>
    %44 = vector.broadcast %42 : vector<1x2xf32> to vector<3x2xf32>
    %45 = arith.addf %43, %44 : vector<3x2xf32>
    %cst_31 = arith.constant 2.000000e+00 : f32
    %46 = vector.broadcast %cst_31 : f32 to vector<3x2xf32>
    %47 = arith.mulf %46, %36 : vector<3x2xf32>
    %48 = arith.subf %45, %47 : vector<3x2xf32>
    %49 = arith.addf %29, %48 : vector<3x2xf32>
    %c0_32 = arith.constant 0 : index
    %c0_33 = arith.constant 0 : index
    %50 = vector.load %arg7[%c0_32, %c0_33] : memref<3x2xf32, #tpu.memory_space<vmem>>, vector<3x2xf32>
    %51 = arith.addf %50, %49 : vector<3x2xf32>
    %c0_34 = arith.constant 0 : index
    %c0_35 = arith.constant 0 : index
    %52 = vector.load %arg7[%c0_34, %c0_35] : memref<3x2xf32, #tpu.memory_space<vmem>>, vector<3x2xf32>
    tpu.vector_store %arg7[%c0_34, %c0_35], %51 {strides = array<i32>} : memref<3x2xf32, #tpu.memory_space<vmem>>, vector<3x2xf32>,
    %c1_i32 = arith.constant 1 : i32
    %53 = arith.cmpi eq, %arg0, %c1_i32 : i32
    %54 = arith.extui %53 : i1 to i32
    %c0_i32_36 = arith.constant 0 : i32
    %55 = arith.cmpi ne, %54, %c0_i32_36 : i32
    scf.if %55 {
      %c0_37 = arith.constant 0 : index
      %c0_38 = arith.constant 0 : index
      %56 = vector.load %arg6[%c0_37, %c0_38] : memref<3x2xf32, #tpu.memory_space<vmem>>, vector<3x2xf32>
      %c0_39 = arith.constant 0 : index
      %c0_40 = arith.constant 0 : index
      %57 = vector.load %arg7[%c0_39, %c0_40] : memref<3x2xf32, #tpu.memory_space<vmem>>, vector<3x2xf32>
      %58 = arith.mulf %56, %57 : vector<3x2xf32>
      %c0_41 = arith.constant 0 : index
      %c0_42 = arith.constant 0 : index
      %59 = vector.load %arg7[%c0_41, %c0_42] : memref<3x2xf32, #tpu.memory_space<vmem>>, vector<3x2xf32>
      tpu.vector_store %arg7[%c0_41, %c0_42], %58 {strides = array<i32>} : memref<3x2xf32, #tpu.memory_space<vmem>>, vector<3x2xf32>,
    } else {
    }
    return
  }
  func.func @transform_0(%arg0: i32) -> (i32, i32, i32, i32) {
    %c0_i32 = arith.constant 0 : i32
    %c0_i32_0 = arith.constant 0 : i32
    %c0_i32_1 = arith.constant 0 : i32
    %c0_i32_2 = arith.constant 0 : i32
    return %arg0, %c0_i32, %c0_i32_0, %c0_i32_1 : i32, i32, i32, i32
  }
  func.func @transform_1(%arg0: i32) -> (i32, i32, i32, i32) {
    %c0_i32 = arith.constant 0 : i32
    %c0_i32_0 = arith.constant 0 : i32
    %c0_i32_1 = arith.constant 0 : i32
    %c0_i32_2 = arith.constant 0 : i32
    return %arg0, %c0_i32, %c0_i32_0, %c0_i32_1 : i32, i32, i32, i32
  }
  func.func @transform_2(%arg0: i32) -> (i32, i32, i32) {
    %c0_i32 = arith.constant 0 : i32
    %c0_i32_0 = arith.constant 0 : i32
    %c0_i32_1 = arith.constant 0 : i32
    return %arg0, %c0_i32, %c0_i32_0 : i32, i32, i32
  }
  func.func @transform_3(%arg0: i32) -> (i32, i32) {
    %c0_i32 = arith.constant 0 : i32
    %c0_i32_0 = arith.constant 0 : i32
    %c0_i32_1 = arith.constant 0 : i32
    return %c0_i32, %c0_i32_0 : i32, i32
  }
  func.func @transform_4(%arg0: i32) -> (i32, i32, i32) {
    %c0_i32 = arith.constant 0 : i32
    %c0_i32_0 = arith.constant 0 : i32
    %c0_i32_1 = arith.constant 0 : i32
    return %arg0, %c0_i32, %c0_i32_0 : i32, i32, i32
  }
  func.func @transform_5(%arg0: i32) -> (i32, i32) {
    %c0_i32 = arith.constant 0 : i32
    %c0_i32_0 = arith.constant 0 : i32
    %c0_i32_1 = arith.constant 0 : i32
    return %c0_i32, %c0_i32_0 : i32, i32
  }
  func.func @transform_6(%arg0: i32) -> (i32, i32) {
    %c0_i32 = arith.constant 0 : i32
    %c0_i32_0 = arith.constant 0 : i32
    %c0_i32_1 = arith.constant 0 : i32
    return %c0_i32, %c0_i32_0 : i32, i32
  }
}

</mosaic_0001>

<llo_original>
// kernel: tpu_custom_call.1
$region0: #{tpu_custom_call.1}
  #allocation0 [shape = 'u32[]', space=smem, size = 0x4, offset = 0x4, fixed_abs, tag = 'smem constant byte address 0x4 - core index']
  #allocation1 [shape = 'u32[144,128]{1,0:T(1,128)}', space=vmem, size = 0x12000, scoped, tag = 'internal scratch']
  %s0 = inlined_call_operand.vmem [shape: f32[2,3,4,289], index: 0, kind: input, shape index: {}]
  %s1 = inlined_call_operand.vmem [shape: f32[2,2,2,289], index: 1, kind: input, shape index: {}]
  %s2 = inlined_call_operand.vmem [shape: f32[2,3,48], index: 2, kind: input, shape index: {}]
  %s3 = inlined_call_operand.vmem [shape: f32[48,32], index: 3, kind: input, shape index: {}]
  %s4 = inlined_call_operand.vmem [shape: f32[2,2,32], index: 4, kind: input, shape index: {}]
  %s5 = inlined_call_operand.vmem [shape: f32[3,2], index: 5, kind: input, shape index: {}]
  %s6 = inlined_call_operand.vmem [shape: f32[3,2], index: 6, kind: output, shape index: {}]
  %s7 = sld [smem:[#allocation0]]
  $region65: #{tpu_custom_call.1} parent=0
    _
  %s9 = ssub.s32 1, %s7
  %s10 = scalar_select 0, %s9, %s7
  loop: start=0, step=1, limit=4
  $region2: #{tpu_custom_call.1} parent=0 // loop_pre_header
    _
  $region3: #{tpu_custom_call.1} parent=0 // loop_header
    %s12 = sphi 0, %s16
    %p13 = scmp.ge.s32.totalorder %s12, 4
    %s22 = sphi 0, %s24
    %s25 = sphi 0, %s22
    %s26 = sphi 0, %s25
    %s42 = sphi 0, %s26
    %s48 = sphi 0, %s50
    %s51 = sphi 0, %s48
    %s52 = sphi 0, %s51
    %s68 = sphi 0, %s52
    %s74 = sphi 0, %s76
    %s77 = sphi 0, %s74
    %s78 = sphi 0, %s77
    %s94 = sphi 0, %s78
    %s98 = sphi 0, %s98
    %s100 = sphi 0, %s98
    %s101 = sphi 0, %s100
    %s115 = sphi 0, %s101
    %s121 = sphi 0, %s123
    %s124 = sphi 0, %s121
    %s125 = sphi 0, %s124
    %s141 = sphi 0, %s125
    %s145 = sphi 0, %s145
    %s147 = sphi 0, %s145
    %s148 = sphi 0, %s147
    %s162 = sphi 0, %s148
    %s166 = sphi 0, %s166
    %s168 = sphi 0, %s166
    %s169 = sphi 0, %s168
    %s183 = sphi 0, %s169
  $region4: #{tpu_custom_call.1} parent=0 // loop_header_branch
    %15 = sbr.rel (%p13) target = $region8
  $region5: #{tpu_custom_call.1} parent=0 // loop_body
    %s17 = ssub.s32 %s12, 1
    %s18 = ssub.s32 %s12, 2
    %s19 = sadd.s32 %s12, 1
    %s20 = ssub.s32 %s12, %s19
    %p21 = scmp.eq.s32.totalorder %s20, 0
    %s23 = sadd.s32 %s22, 1
    %s24 = scalar_select %p21, %s22, %s23
    %p27 = pneg %p21
    %p28 = scmp.eq.s32.totalorder %s12, 1
    %p29 = por %p27, %p28
    %p30 = scmp.ne.s32.totalorder %s22, %s25
    %p31 = scmp.eq.s32.totalorder %s12, 0
    %p32 = por %p30, %p31
    %p33 = scmp.ne.s32.totalorder %s22, %s25
    %p34 = scmp.eq.s32.totalorder %s17, 1
    %p35 = por %p33, %p34
    %p36 = scmp.ne.s32.totalorder %s25, %s26
    %p37 = scmp.eq.s32.totalorder %s17, 0
    %p38 = por %p36, %p37
    %p39 = scmp.ne.s32.totalorder %s25, %s26
    %p40 = scmp.eq.s32.totalorder %s18, 1
    %p41 = por %p39, %p40
    %p43 = scmp.ne.s32.totalorder %s26, %s42
    %p44 = scmp.eq.s32.totalorder %s18, 0
    %p45 = por %p43, %p44
    %s46 = ssub.s32 %s12, %s19
    %p47 = scmp.eq.s32.totalorder %s46, 0
    %s49 = sadd.s32 %s48, 1
    %s50 = scalar_select %p47, %s48, %s49
    %p53 = pneg %p47
    %p54 = scmp.eq.s32.totalorder %s12, 1
    %p55 = por %p53, %p54
    %p56 = scmp.ne.s32.totalorder %s48, %s51
    %p57 = scmp.eq.s32.totalorder %s12, 0
    %p58 = por %p56, %p57
    %p59 = scmp.ne.s32.totalorder %s48, %s51
    %p60 = scmp.eq.s32.totalorder %s17, 1
    %p61 = por %p59, %p60
    %p62 = scmp.ne.s32.totalorder %s51, %s52
    %p63 = scmp.eq.s32.totalorder %s17, 0
    %p64 = por %p62, %p63
    %p65 = scmp.ne.s32.totalorder %s51, %s52
    %p66 = scmp.eq.s32.totalorder %s18, 1
    %p67 = por %p65, %p66
    %p69 = scmp.ne.s32.totalorder %s52, %s68
    %p70 = scmp.eq.s32.totalorder %s18, 0
    %p71 = por %p69, %p70
    %s72 = ssub.s32 %s12, %s19
    %p73 = scmp.eq.s32.totalorder %s72, 0
    %s75 = sadd.s32 %s74, 1
    %s76 = scalar_select %p73, %s74, %s75
    %p79 = pneg %p73
    %p80 = scmp.eq.s32.totalorder %s12, 1
    %p81 = por %p79, %p80
    %p82 = scmp.ne.s32.totalorder %s74, %s77
    %p83 = scmp.eq.s32.totalorder %s12, 0
    %p84 = por %p82, %p83
    %p85 = scmp.ne.s32.totalorder %s74, %s77
    %p86 = scmp.eq.s32.totalorder %s17, 1
    %p87 = por %p85, %p86
    %p88 = scmp.ne.s32.totalorder %s77, %s78
    %p89 = scmp.eq.s32.totalorder %s17, 0
    %p90 = por %p88, %p89
    %p91 = scmp.ne.s32.totalorder %s77, %s78
    %p92 = scmp.eq.s32.totalorder %s18, 1
    %p93 = por %p91, %p92
    %p95 = scmp.ne.s32.totalorder %s78, %s94
    %p96 = scmp.eq.s32.totalorder %s18, 0
    %p97 = por %p95, %p96
    %s99 = sadd.s32 %s98, 1
    %p102 = scmp.eq.s32.totalorder %s12, 1
    %p103 = scmp.ne.s32.totalorder %s98, %s100
    %p104 = scmp.eq.s32.totalorder %s12, 0
    %p105 = por %p103, %p104
    %p106 = scmp.ne.s32.totalorder %s98, %s100
    %p107 = scmp.eq.s32.totalorder %s17, 1
    %p108 = por %p106, %p107
    %p109 = scmp.ne.s32.totalorder %s100, %s101
    %p110 = scmp.eq.s32.totalorder %s17, 0
    %p111 = por %p109, %p110
    %p112 = scmp.ne.s32.totalorder %s100, %s101
    %p113 = scmp.eq.s32.totalorder %s18, 1
    %p114 = por %p112, %p113
    %p116 = scmp.ne.s32.totalorder %s101, %s115
    %p117 = scmp.eq.s32.totalorder %s18, 0
    %p118 = por %p116, %p117
    %s119 = ssub.s32 %s12, %s19
    %p120 = scmp.eq.s32.totalorder %s119, 0
    %s122 = sadd.s32 %s121, 1
    %s123 = scalar_select %p120, %s121, %s122
    %p126 = pneg %p120
    %p127 = scmp.eq.s32.totalorder %s12, 1
    %p128 = por %p126, %p127
    %p129 = scmp.ne.s32.totalorder %s121, %s124
    %p130 = scmp.eq.s32.totalorder %s12, 0
    %p131 = por %p129, %p130
    %p132 = scmp.ne.s32.totalorder %s121, %s124
    %p133 = scmp.eq.s32.totalorder %s17, 1
    %p134 = por %p132, %p133
    %p135 = scmp.ne.s32.totalorder %s124, %s125
    %p136 = scmp.eq.s32.totalorder %s17, 0
    %p137 = por %p135, %p136
    %p138 = scmp.ne.s32.totalorder %s124, %s125
    %p139 = scmp.eq.s32.totalorder %s18, 1
    %p140 = por %p138, %p139
    %p142 = scmp.ne.s32.totalorder %s125, %s141
    %p143 = scmp.eq.s32.totalorder %s18, 0
    %p144 = por %p142, %p143
    %s146 = sadd.s32 %s145, 1
    %p149 = scmp.eq.s32.totalorder %s12, 1
    %p150 = scmp.ne.s32.totalorder %s145, %s147
    %p151 = scmp.eq.s32.totalorder %s12, 0
    %p152 = por %p150, %p151
    %p153 = scmp.ne.s32.totalorder %s145, %s147
    %p154 = scmp.eq.s32.totalorder %s17, 1
    %p155 = por %p153, %p154
    %p156 = scmp.ne.s32.totalorder %s147, %s148
    %p157 = scmp.eq.s32.totalorder %s17, 0
    %p158 = por %p156, %p157
    %p159 = scmp.ne.s32.totalorder %s147, %s148
    %p160 = scmp.eq.s32.totalorder %s18, 1
    %p161 = por %p159, %p160
    %p163 = scmp.ne.s32.totalorder %s148, %s162
    %p164 = scmp.eq.s32.totalorder %s18, 0
    %p165 = por %p163, %p164
    %s167 = sadd.s32 %s166, 1
    %p170 = scmp.eq.s32.totalorder %s12, 1
    %p171 = scmp.ne.s32.totalorder %s166, %s168
    %p172 = scmp.eq.s32.totalorder %s12, 0
    %p173 = por %p171, %p172
    %p174 = scmp.ne.s32.totalorder %s166, %s168
    %p175 = scmp.eq.s32.totalorder %s17, 1
    %p176 = por %p174, %p175
    %p177 = scmp.ne.s32.totalorder %s168, %s169
    %p178 = scmp.eq.s32.totalorder %s17, 0
    %p179 = por %p177, %p178
    %p180 = scmp.ne.s32.totalorder %s168, %s169
    %p181 = scmp.eq.s32.totalorder %s18, 1
    %p182 = por %p180, %p181
    %p184 = scmp.ne.s32.totalorder %s169, %s183
    %p185 = scmp.eq.s32.totalorder %s18, 0
    %p186 = por %p184, %p185
    %p187 = scmp.le.s32.totalorder 1, %s12
    %p188 = scmp.lt.s32.totalorder %s12, 3
    %p189 = pnand %p187, %p188
    %p190 = pneg %p189
    // Predicated region
    $region9: #{tpu_custom_call.1} parent=5 // pred_check
      _
    $region10: #{tpu_custom_call.1} parent=5 // pred_check_branch
      %192 = sbr.rel (%p189) target = $region12
    $region11: #{tpu_custom_call.1} parent=5 // pred_region
      %s193 = ssub.s32 %s12, 1
      // Predicated region
      $region13: #{tpu_custom_call.1} parent=11 // pred_check
        %p194 = pneg %p111
      $region14: #{tpu_custom_call.1} parent=11 // pred_check_branch
        %196 = sbr.rel (%p194) target = $region16
      $region15: #{tpu_custom_call.1} parent=11 // pred_region
        _
      $region16: #{tpu_custom_call.1} parent=11 // pred_fallthru
        _
      // Predicated region
      $region17: #{tpu_custom_call.1} parent=11 // pred_check
        %p197 = pneg %p158
      $region18: #{tpu_custom_call.1} parent=11 // pred_check_branch
        %199 = sbr.rel (%p197) target = $region20
      $region19: #{tpu_custom_call.1} parent=11 // pred_region
        _
      $region20: #{tpu_custom_call.1} parent=11 // pred_fallthru
        _
    $region12: #{tpu_custom_call.1} parent=5 // pred_fallthru
      _
    %p200 = scmp.lt.s32.totalorder %s12, 2
    // Predicated region
    $region21: #{tpu_custom_call.1} parent=5 // pred_check
      %p201 = pneg %p200
    $region22: #{tpu_custom_call.1} parent=5 // pred_check_branch
      %203 = sbr.rel (%p201) target = $region24
    $region23: #{tpu_custom_call.1} parent=5 // pred_region
      // Predicated region
      $region25: #{tpu_custom_call.1} parent=23 // pred_check
        %p204 = pneg %p32
      $region26: #{tpu_custom_call.1} parent=23 // pred_check_branch
        %206 = sbr.rel (%p204) target = $region28
      $region27: #{tpu_custom_call.1} parent=23 // pred_region
        %p207 = scmp.lt.s32.totalorder %s12, 1
        %s208 = scalar_select %p207, %s12, 1
        %s209 = smul.addr %s208, 9
        %s210 = smul.addr %s209, 4
        %s211 = scalar_lea.vmem %s0, %s210
      $region28: #{tpu_custom_call.1} parent=23 // pred_fallthru
        _
      // Predicated region
      $region29: #{tpu_custom_call.1} parent=23 // pred_check
        %p212 = pneg %p58
      $region30: #{tpu_custom_call.1} parent=23 // pred_check_branch
        %214 = sbr.rel (%p212) target = $region32
      $region31: #{tpu_custom_call.1} parent=23 // pred_region
        %p215 = scmp.lt.s32.totalorder %s12, 1
        %s216 = scalar_select %p215, %s12, 1
        %s217 = smul.addr %s216, 6
        %s218 = smul.addr %s217, 2
        %s219 = scalar_lea.vmem %s1, %s218
      $region32: #{tpu_custom_call.1} parent=23 // pred_fallthru
        _
      // Predicated region
      $region33: #{tpu_custom_call.1} parent=23 // pred_check
        %p220 = pneg %p84
      $region34: #{tpu_custom_call.1} parent=23 // pred_check_branch
        %222 = sbr.rel (%p220) target = $region36
      $region35: #{tpu_custom_call.1} parent=23 // pred_region
        %p223 = scmp.lt.s32.totalorder %s12, 1
        %s224 = scalar_select %p223, %s12, 1
        %s225 = smul.addr %s224, 4
        %s226 = scalar_lea.vmem %s2, %s225
      $region36: #{tpu_custom_call.1} parent=23 // pred_fallthru
        _
      // Predicated region
      $region37: #{tpu_custom_call.1} parent=23 // pred_check
        %p227 = pneg %p131
      $region38: #{tpu_custom_call.1} parent=23 // pred_check_branch
        %229 = sbr.rel (%p227) target = $region40
      $region39: #{tpu_custom_call.1} parent=23 // pred_region
        %p230 = scmp.lt.s32.totalorder %s12, 1
        %s231 = scalar_select %p230, %s12, 1
        %s232 = smul.addr %s231, 2
        %s233 = scalar_lea.vmem %s4, %s232
      $region40: #{tpu_custom_call.1} parent=23 // pred_fallthru
        _
    $region24: #{tpu_custom_call.1} parent=5 // pred_fallthru
      _
    %p234 = scmp.le.s32.totalorder 1, %s12
    %p235 = scmp.lt.s32.totalorder %s12, 3
    %p236 = pnand %p234, %p235
    %p237 = pneg %p236
    // Predicated region
    $region41: #{tpu_custom_call.1} parent=5 // pred_check
      _
    $region42: #{tpu_custom_call.1} parent=5 // pred_check_branch
      %239 = sbr.rel (%p236) target = $region44
    $region43: #{tpu_custom_call.1} parent=5 // pred_region
      %s240 = ssub.s32 %s12, 1
      %p241 = scmp.lt.s32.totalorder %s17, 1
      %s242 = scalar_select %p241, %s17, 1
      %s243 = smul.addr %s242, 9
      %s244 = smul.addr %s243, 4
      %s245 = scalar_lea.vmem %s0, %s244
      %p246 = pneg %p38
      %p247 = pneg %p35
      %p248 = scmp.lt.s32.totalorder %s17, 1
      %s249 = scalar_select %p248, %s17, 1
      %s250 = smul.addr %s249, 6
      %s251 = smul.addr %s250, 2
      %s252 = scalar_lea.vmem %s1, %s251
      %p253 = pneg %p64
      %p254 = pneg %p61
      %p255 = scmp.lt.s32.totalorder %s17, 1
      %s256 = scalar_select %p255, %s17, 1
      %s257 = smul.addr %s256, 4
      %s258 = scalar_lea.vmem %s2, %s257
      %p259 = pneg %p90
      %p260 = pneg %p87
      %p261 = pneg %p111
      %p262 = pneg %p108
      %p263 = scmp.lt.s32.totalorder %s17, 1
      %s264 = scalar_select %p263, %s17, 1
      %s265 = smul.addr %s264, 2
      %s266 = scalar_lea.vmem %s4, %s265
      %p267 = pneg %p137
      %p268 = pneg %p134
      %p269 = pneg %p158
      %p270 = pneg %p155
      %p271 = pneg %p179
      %p272 = pneg %p176
      %p273 = scmp.lt.s32.totalorder %s17, 1
      %s274 = scalar_select %p273, %s17, 1
      %s275 = smul.addr %s274, 9
      %s276 = smul.addr %s275, 4
      %s277 = scalar_lea.vmem %s0, %s276
      %p278 = scmp.lt.s32.totalorder %s17, 1
      %s279 = scalar_select %p278, %s17, 1
      %s280 = smul.addr %s279, 6
      %s281 = smul.addr %s280, 2
      %s282 = scalar_lea.vmem %s1, %s281
      %p283 = scmp.lt.s32.totalorder %s17, 1
      %s284 = scalar_select %p283, %s17, 1
      %s285 = smul.addr %s284, 4
      %s286 = scalar_lea.vmem %s2, %s285
      %p287 = scmp.lt.s32.totalorder %s17, 1
      %s288 = scalar_select %p287, %s17, 1
      %s289 = smul.addr %s288, 2
      %s290 = scalar_lea.vmem %s4, %s289
      %p291 = scmp.eq.s32.totalorder %s17, 0
      // Predicated region
      $region45: #{tpu_custom_call.1} parent=43 // pred_check
        %p292 = pneg %p291
      $region46: #{tpu_custom_call.1} parent=43 // pred_check_branch
        %294 = sbr.rel (%p292) target = $region48
      $region47: #{tpu_custom_call.1} parent=43 // pred_region
        %vm295 = vcmask 10240
        %296 = vst.msk [vmem:[%s6] sm:$0x7] %vm295, 0.0
      $region48: #{tpu_custom_call.1} parent=43 // pred_fallthru
        _
      %v297 = vld [vmem:[%s277] sm:$0xff]
      %v298 = vld [vmem:[%s277 + $0x8] sm:$0xf]
      %v299 = vld [vmem:[%s277 + $0xc] sm:$0xff]
      %v300 = vld [vmem:[%s277 + $0x14] sm:$0xf]
      %v301 = vld [vmem:[%s277 + $0x18] sm:$0xff]
      %v302 = vld [vmem:[%s277 + $0x20] sm:$0xf]
      %v303 = vld [vmem:[%s282] sm:$0x3f]
      %v304 = vld [vmem:[%s282 + $0x6] sm:$0x3f]
      %v308 = vcombine.high %v297, %v297
      %v309 = vcombine.high %v299, %v299
      %v310 = vcombine.high %v301, %v301
      %vm314 = vcmask 1043456
      %v315 = vsel %vm314, %v297, 0.0
      %v316 = vrot.slane %v315, 4
      %v317 = vadd.f32 %v315, %v316
      %v318 = vrot.slane %v317, 2
      %v319 = vadd.f32 %v317, %v318
      %v320 = vrot.slane %v319, 1
      %v321 = vadd.f32 %v319, %v320
      %v322 = vsel %vm314, %v308, 0.0
      %v323 = vrot.slane %v322, 4
      %v324 = vadd.f32 %v322, %v323
      %v325 = vrot.slane %v324, 2
      %v326 = vadd.f32 %v324, %v325
      %v327 = vrot.slane %v326, 1
      %v328 = vadd.f32 %v326, %v327
      %vm329 = vcmask 265216
      %v330 = vsel %vm329, %v298, 0.0
      %v331 = vrot.slane %v330, 4
      %v332 = vadd.f32 %v330, %v331
      %v333 = vrot.slane %v332, 2
      %v334 = vadd.f32 %v332, %v333
      %v335 = vrot.slane %v334, 1
      %v336 = vadd.f32 %v334, %v335
      %v337 = vsel %vm314, %v299, 0.0
      %v338 = vrot.slane %v337, 4
      %v339 = vadd.f32 %v337, %v338
      %v340 = vrot.slane %v339, 2
      %v341 = vadd.f32 %v339, %v340
      %v342 = vrot.slane %v341, 1
      %v343 = vadd.f32 %v341, %v342
      %v344 = vsel %vm314, %v309, 0.0
      %v345 = vrot.slane %v344, 4
      %v346 = vadd.f32 %v344, %v345
      %v347 = vrot.slane %v346, 2
      %v348 = vadd.f32 %v346, %v347
      %v349 = vrot.slane %v348, 1
      %v350 = vadd.f32 %v348, %v349
      %v351 = vsel %vm329, %v300, 0.0
      %v352 = vrot.slane %v351, 4
      %v353 = vadd.f32 %v351, %v352
      %v354 = vrot.slane %v353, 2
      %v355 = vadd.f32 %v353, %v354
      %v356 = vrot.slane %v355, 1
      %v357 = vadd.f32 %v355, %v356
      %v358 = vsel %vm314, %v301, 0.0
      %v359 = vrot.slane %v358, 4
      %v360 = vadd.f32 %v358, %v359
      %v361 = vrot.slane %v360, 2
      %v362 = vadd.f32 %v360, %v361
      %v363 = vrot.slane %v362, 1
      %v364 = vadd.f32 %v362, %v363
      %v365 = vsel %vm314, %v310, 0.0
      %v366 = vrot.slane %v365, 4
      %v367 = vadd.f32 %v365, %v366
      %v368 = vrot.slane %v367, 2
      %v369 = vadd.f32 %v367, %v368
      %v370 = vrot.slane %v369, 1
      %v371 = vadd.f32 %v369, %v370
      %v372 = vsel %vm329, %v302, 0.0
      %v373 = vrot.slane %v372, 4
      %v374 = vadd.f32 %v372, %v373
      %v375 = vrot.slane %v374, 2
      %v376 = vadd.f32 %v374, %v375
      %v377 = vrot.slane %v376, 1
      %v378 = vadd.f32 %v376, %v377
      %v379 = vmul.f32 %v321, 0.25
      %v380 = vmul.f32 %v328, 0.25
      %v381 = vmul.f32 %v336, 0.25
      %v382 = vmul.f32 %v343, 0.25
      %v383 = vmul.f32 %v350, 0.25
      %v384 = vmul.f32 %v357, 0.25
      %v385 = vmul.f32 %v364, 0.25
      %v386 = vmul.f32 %v371, 0.25
      %v387 = vmul.f32 %v378, 0.25
      %v390 = vcombine.high %v303, %v303
      %v392 = vunpack.c.l.s4 1983009808
      %v393 = vunpack.c.0.s8 %v392
      %v394 = vlaneseq
      %v395 = vshrl.u32 %v394, 7
      %v396 = vsub.s32 %v393, %v395
      %v397 = vrot.slane %v303, %v396
      %v399 = vunpack.c.l.s4 1983009808
      %v400 = vunpack.c.0.s8 %v399
      %v401 = vlaneseq
      %v402 = vshrl.u32 %v401, 7
      %v403 = vsub.s32 %v400, %v402
      %v404 = vrot.slane %v390, %v403
      %v405 = vcombine.high %v397, %v397
      %v406 = vcombine.high %v304, %v304
      %v408 = vunpack.c.l.s4 1983009808
      %v409 = vunpack.c.0.s8 %v408
      %v410 = vlaneseq
      %v411 = vshrl.u32 %v410, 7
      %v412 = vsub.s32 %v409, %v411
      %v413 = vrot.slane %v304, %v412
      %v415 = vunpack.c.l.s4 1983009808
      %v416 = vunpack.c.0.s8 %v415
      %v417 = vlaneseq
      %v418 = vshrl.u32 %v417, 7
      %v419 = vsub.s32 %v416, %v418
      %v420 = vrot.slane %v406, %v419
      %v421 = vcombine.high %v413, %v413
      %vm428 = vcmask 1041408
      %v429 = vsel %vm428, %v397, 0.0
      %v430 = vrot.slane %v429, 4
      %v431 = vadd.f32 %v429, %v430
      %v432 = vrot.slane %v431, 2
      %v433 = vadd.f32 %v431, %v432
      %v434 = vrot.slane %v433, 1
      %v435 = vadd.f32 %v433, %v434
      %v436 = vsel %vm428, %v405, 0.0
      %v437 = vrot.slane %v436, 4
      %v438 = vadd.f32 %v436, %v437
      %v439 = vrot.slane %v438, 2
      %v440 = vadd.f32 %v438, %v439
      %v441 = vrot.slane %v440, 1
      %v442 = vadd.f32 %v440, %v441
      %vm443 = vcmask 263168
      %v444 = vsel %vm443, %v404, 0.0
      %v445 = vrot.slane %v444, 4
      %v446 = vadd.f32 %v444, %v445
      %v447 = vrot.slane %v446, 2
      %v448 = vadd.f32 %v446, %v447
      %v449 = vrot.slane %v448, 1
      %v450 = vadd.f32 %v448, %v449
      %v451 = vsel %vm428, %v413, 0.0
      %v452 = vrot.slane %v451, 4
      %v453 = vadd.f32 %v451, %v452
      %v454 = vrot.slane %v453, 2
      %v455 = vadd.f32 %v453, %v454
      %v456 = vrot.slane %v455, 1
      %v457 = vadd.f32 %v455, %v456
      %v458 = vsel %vm428, %v421, 0.0
      %v459 = vrot.slane %v458, 4
      %v460 = vadd.f32 %v458, %v459
      %v461 = vrot.slane %v460, 2
      %v462 = vadd.f32 %v460, %v461
      %v463 = vrot.slane %v462, 1
      %v464 = vadd.f32 %v462, %v463
      %v465 = vsel %vm443, %v420, 0.0
      %v466 = vrot.slane %v465, 4
      %v467 = vadd.f32 %v465, %v466
      %v468 = vrot.slane %v467, 2
      %v469 = vadd.f32 %v467, %v468
      %v470 = vrot.slane %v469, 1
      %v471 = vadd.f32 %v469, %v470
      %v472 = vmul.f32 %v435, 0.5
      %v473 = vmul.f32 %v442, 0.5
      %v474 = vmul.f32 %v450, 0.5
      %v475 = vmul.f32 %v457, 0.5
      %v476 = vmul.f32 %v464, 0.5
      %v477 = vmul.f32 %v471, 0.5
      %vm487 = vcmask 1041409
      %v488 = vsel %vm487, %v382, %v379
      %vm489 = vcmask 1042434
      %v490 = vsel %vm489, %v385, %v488
      %v491 = vsel %vm487, %v383, %v380
      %v492 = vsel %vm489, %v386, %v491
      %v493 = vsel %vm487, %v384, %v381
      %v494 = vsel %vm489, %v387, %v493
      %v503 = vsel %vm487, %v475, %v472
      %v504 = vsel %vm487, %v476, %v473
      %v505 = vsel %vm487, %v477, %v474
      %vm508 = vcmask 269312
      %v509 = vsel %vm508, %v494, 0
      %v511 = vsel %vm508, %v505, 0
      %513 = vmatprep.subr.mxu0 %v504
      %514 = vmatpush1.xpose.msra.mxu0 %v503
      %515 = vmatprep.subr.mxu0 0.0
      %516 = vmatpush1.xpose.msra.mxu0 0.0
      %517 = vmatprep.subr.mxu0 0.0
      %518 = vmatpush1.xpose.msra.mxu0 0.0
      %519 = vmatprep.subr.mxu0 0.0
      %520 = vmatpush1.xpose.msra.mxu0 0.0
      %521 = vmatprep.subr.mxu0 0.0
      %522 = vmatpush1.xpose.msra.mxu0 0.0
      %523 = vmatprep.subr.mxu0 0.0
      %524 = vmatpush1.xpose.msra.mxu0 0.0
      %525 = vmatprep.subr.mxu0 0.0
      %526 = vmatpush1.xpose.msra.mxu0 0.0
      %527 = vmatprep.subr.mxu0 0.0
      %528 = vmatpush1.xpose.msra.mxu0 0.0
      %529 = vmatprep.subr.mxu0 0.0
      %530 = vmatpush1.xpose.msra.mxu0 0.0
      %531 = vmatprep.subr.mxu0 0.0
      %532 = vmatpush1.xpose.msra.mxu0 0.0
      %533 = vmatprep.subr.mxu0 0.0
      %534 = vmatpush1.xpose.msra.mxu0 0.0
      %535 = vmatprep.subr.mxu0 0.0
      %536 = vmatpush1.xpose.msra.mxu0 0.0
      %537 = vmatprep.subr.mxu0 0.0
      %538 = vmatpush1.xpose.msra.mxu0 0.0
      %539 = vmatprep.subr.mxu0 0.0
      %540 = vmatpush1.xpose.msra.mxu0 0.0
      %541 = vmatprep.subr.mxu0 0.0
      %542 = vmatpush1.xpose.msra.mxu0 0.0
      %543 = vmatprep.subr.mxu0 0.0
      %544 = vmatpush1.xpose.msra.mxu0 0.0
      %545 = vmatprep.subr.mxu0 0.0
      %546 = vmatpush1.xpose.msra.mxu0 0.0
      %547 = vmatprep.subr.mxu0 0.0
      %548 = vmatpush1.xpose.msra.mxu0 0.0
      %549 = vmatprep.subr.mxu0 0.0
      %550 = vmatpush1.xpose.msra.mxu0 0.0
      %551 = vmatprep.subr.mxu0 0.0
      %552 = vmatpush1.xpose.msra.mxu0 0.0
      %553 = vmatprep.subr.mxu0 0.0
      %554 = vmatpush1.xpose.msra.mxu0 0.0
      %555 = vmatprep.subr.mxu0 0.0
      %556 = vmatpush1.xpose.msra.mxu0 0.0
      %557 = vmatprep.subr.mxu0 0.0
      %558 = vmatpush1.xpose.msra.mxu0 0.0
      %559 = vmatprep.subr.mxu0 0.0
      %560 = vmatpush1.xpose.msra.mxu0 0.0
      %561 = vmatprep.subr.mxu0 0.0
      %562 = vmatpush1.xpose.msra.mxu0 0.0
      %563 = vmatprep.subr.mxu0 0.0
      %564 = vmatpush1.xpose.msra.mxu0 0.0
      %565 = vmatprep.subr.mxu0 0.0
      %566 = vmatpush1.xpose.msra.mxu0 0.0
      %567 = vmatprep.subr.mxu0 0.0
      %568 = vmatpush1.xpose.msra.mxu0 0.0
      %569 = vmatprep.subr.mxu0 0.0
      %570 = vmatpush1.xpose.msra.mxu0 0.0
      %571 = vmatprep.subr.mxu0 0.0
      %572 = vmatpush1.xpose.msra.mxu0 0.0
      %573 = vmatprep.subr.mxu0 0.0
      %574 = vmatpush1.xpose.msra.mxu0 0.0
      %575 = vmatprep.subr.mxu0 0.0
      %576 = vmatpush1.xpose.msra.mxu0 0.0
      %577 = vmatprep.mubr.f32.mxu0 %v492
      %578 = vmatmul.mubr.f32.gmra.mrb[0].mxu0 %v490
      %v579 = vpop.f32.mrb[0].mxu0
      %v580 = vadd.f32 0.0, %v579
      %v581 = vpop.f32.mrb[0].mxu0
      %582 = vdwg.mxu0
      %583 = vmatprep.subr.mxu0 0.0
      %584 = vmatpush1.xpose.msra.mxu0 %v511
      %585 = vmatprep.subr.mxu0 0.0
      %586 = vmatpush1.xpose.msra.mxu0 0.0
      %587 = vmatprep.subr.mxu0 0.0
      %588 = vmatpush1.xpose.msra.mxu0 0.0
      %589 = vmatprep.subr.mxu0 0.0
      %590 = vmatpush1.xpose.msra.mxu0 0.0
      %591 = vmatprep.subr.mxu0 0.0
      %592 = vmatpush1.xpose.msra.mxu0 0.0
      %593 = vmatprep.subr.mxu0 0.0
      %594 = vmatpush1.xpose.msra.mxu0 0.0
      %595 = vmatprep.subr.mxu0 0.0
      %596 = vmatpush1.xpose.msra.mxu0 0.0
      %597 = vmatprep.subr.mxu0 0.0
      %598 = vmatpush1.xpose.msra.mxu0 0.0
      %599 = vmatprep.subr.mxu0 0.0
      %600 = vmatpush1.xpose.msra.mxu0 0.0
      %601 = vmatprep.subr.mxu0 0.0
      %602 = vmatpush1.xpose.msra.mxu0 0.0
      %603 = vmatprep.subr.mxu0 0.0
      %604 = vmatpush1.xpose.msra.mxu0 0.0
      %605 = vmatprep.subr.mxu0 0.0
      %606 = vmatpush1.xpose.msra.mxu0 0.0
      %607 = vmatprep.subr.mxu0 0.0
      %608 = vmatpush1.xpose.msra.mxu0 0.0
      %609 = vmatprep.subr.mxu0 0.0
      %610 = vmatpush1.xpose.msra.mxu0 0.0
      %611 = vmatprep.subr.mxu0 0.0
      %612 = vmatpush1.xpose.msra.mxu0 0.0
      %613 = vmatprep.subr.mxu0 0.0
      %614 = vmatpush1.xpose.msra.mxu0 0.0
      %615 = vmatprep.subr.mxu0 0.0
      %616 = vmatpush1.xpose.msra.mxu0 0.0
      %617 = vmatprep.subr.mxu0 0.0
      %618 = vmatpush1.xpose.msra.mxu0 0.0
      %619 = vmatprep.subr.mxu0 0.0
      %620 = vmatpush1.xpose.msra.mxu0 0.0
      %621 = vmatprep.subr.mxu0 0.0
      %622 = vmatpush1.xpose.msra.mxu0 0.0
      %623 = vmatprep.subr.mxu0 0.0
      %624 = vmatpush1.xpose.msra.mxu0 0.0
      %625 = vmatprep.subr.mxu0 0.0
      %626 = vmatpush1.xpose.msra.mxu0 0.0
      %627 = vmatprep.subr.mxu0 0.0
      %628 = vmatpush1.xpose.msra.mxu0 0.0
      %629 = vmatprep.subr.mxu0 0.0
      %630 = vmatpush1.xpose.msra.mxu0 0.0
      %631 = vmatprep.subr.mxu0 0.0
      %632 = vmatpush1.xpose.msra.mxu0 0.0
      %633 = vmatprep.subr.mxu0 0.0
      %634 = vmatpush1.xpose.msra.mxu0 0.0
      %635 = vmatprep.subr.mxu0 0.0
      %636 = vmatpush1.xpose.msra.mxu0 0.0
      %637 = vmatprep.subr.mxu0 0.0
      %638 = vmatpush1.xpose.msra.mxu0 0.0
      %639 = vmatprep.subr.mxu0 0.0
      %640 = vmatpush1.xpose.msra.mxu0 0.0
      %641 = vmatprep.subr.mxu0 0.0
      %642 = vmatpush1.xpose.msra.mxu0 0.0
      %643 = vmatprep.subr.mxu0 0.0
      %644 = vmatpush1.xpose.msra.mxu0 0.0
      %645 = vmatprep.subr.mxu0 0.0
      %646 = vmatpush1.xpose.msra.mxu0 0.0
      %647 = vmatprep.mubr.f32.mxu0 0.0
      %648 = vmatmul.mubr.f32.gmra.mrb[0].mxu0 %v509
      %v649 = vpop.f32.mrb[0].mxu0
      %v650 = vadd.f32 %v580, %v649
      %v651 = vpop.f32.mrb[0].mxu0
      %652 = vdwg.mxu0
      %v653 = vmul.f32 %v379, %v379
      %v654 = vmul.f32 %v380, %v380
      %v655 = vmul.f32 %v381, %v381
      %v656 = vmul.f32 %v382, %v382
      %v657 = vmul.f32 %v383, %v383
      %v658 = vmul.f32 %v384, %v384
      %v659 = vmul.f32 %v385, %v385
      %v660 = vmul.f32 %v386, %v386
      %v661 = vmul.f32 %v387, %v387
      %v671 = vsel %vm487, %v656, %v653
      %v672 = vsel %vm489, %v659, %v671
      %v673 = vsel %vm487, %v657, %v654
      %v674 = vsel %vm489, %v660, %v673
      %v675 = vsel %vm487, %v658, %v655
      %v676 = vsel %vm489, %v661, %v675
      %vm680 = vcmask 1042432
      %v681 = vsel %vm680, %v672, 0.0
      %v682 = vsel %vm680, %v674, 0.0
      %v683 = vadd.f32 %v681, %v682
      %vm684 = vcmask 264192
      %v685 = vsel %vm684, %v676, 0.0
      %v686 = vadd.f32 %v683, %v685
      %687 = vadd.xlane.f32.xlu0 %v686
      %v688 = vpop.xlane.xlu0 %687
      %v689 = vmul.f32 %v472, %v472
      %v690 = vmul.f32 %v473, %v473
      %v691 = vmul.f32 %v474, %v474
      %v692 = vmul.f32 %v475, %v475
      %v693 = vmul.f32 %v476, %v476
      %v694 = vmul.f32 %v477, %v477
      %v701 = vsel %vm487, %v692, %v689
      %v702 = vsel %vm487, %v693, %v690
      %v703 = vsel %vm487, %v694, %v691
      %v707 = vsel %vm508, 1.0, 0
      %v709 = vsel %vm508, %v703, 0
      %711 = vmatprep.subr.mxu0 %v702
      %712 = vmatpush1.xpose.msra.mxu0 %v701
      %713 = vmatprep.subr.mxu0 0.0
      %714 = vmatpush1.xpose.msra.mxu0 0.0
      %715 = vmatprep.subr.mxu0 0.0
      %716 = vmatpush1.xpose.msra.mxu0 0.0
      %717 = vmatprep.subr.mxu0 0.0
      %718 = vmatpush1.xpose.msra.mxu0 0.0
      %719 = vmatprep.subr.mxu0 0.0
      %720 = vmatpush1.xpose.msra.mxu0 0.0
      %721 = vmatprep.subr.mxu0 0.0
      %722 = vmatpush1.xpose.msra.mxu0 0.0
      %723 = vmatprep.subr.mxu0 0.0
      %724 = vmatpush1.xpose.msra.mxu0 0.0
      %725 = vmatprep.subr.mxu0 0.0
      %726 = vmatpush1.xpose.msra.mxu0 0.0
      %727 = vmatprep.subr.mxu0 0.0
      %728 = vmatpush1.xpose.msra.mxu0 0.0
      %729 = vmatprep.subr.mxu0 0.0
      %730 = vmatpush1.xpose.msra.mxu0 0.0
      %731 = vmatprep.subr.mxu0 0.0
      %732 = vmatpush1.xpose.msra.mxu0 0.0
      %733 = vmatprep.subr.mxu0 0.0
      %734 = vmatpush1.xpose.msra.mxu0 0.0
      %735 = vmatprep.subr.mxu0 0.0
      %736 = vmatpush1.xpose.msra.mxu0 0.0
      %737 = vmatprep.subr.mxu0 0.0
      %738 = vmatpush1.xpose.msra.mxu0 0.0
      %739 = vmatprep.subr.mxu0 0.0
      %740 = vmatpush1.xpose.msra.mxu0 0.0
      %741 = vmatprep.subr.mxu0 0.0
      %742 = vmatpush1.xpose.msra.mxu0 0.0
      %743 = vmatprep.subr.mxu0 0.0
      %744 = vmatpush1.xpose.msra.mxu0 0.0
      %745 = vmatprep.subr.mxu0 0.0
      %746 = vmatpush1.xpose.msra.mxu0 0.0
      %747 = vmatprep.subr.mxu0 0.0
      %748 = vmatpush1.xpose.msra.mxu0 0.0
      %749 = vmatprep.subr.mxu0 0.0
      %750 = vmatpush1.xpose.msra.mxu0 0.0
      %751 = vmatprep.subr.mxu0 0.0
      %752 = vmatpush1.xpose.msra.mxu0 0.0
      %753 = vmatprep.subr.mxu0 0.0
      %754 = vmatpush1.xpose.msra.mxu0 0.0
      %755 = vmatprep.subr.mxu0 0.0
      %756 = vmatpush1.xpose.msra.mxu0 0.0
      %757 = vmatprep.subr.mxu0 0.0
      %758 = vmatpush1.xpose.msra.mxu0 0.0
      %759 = vmatprep.subr.mxu0 0.0
      %760 = vmatpush1.xpose.msra.mxu0 0.0
      %761 = vmatprep.subr.mxu0 0.0
      %762 = vmatpush1.xpose.msra.mxu0 0.0
      %763 = vmatprep.subr.mxu0 0.0
      %764 = vmatpush1.xpose.msra.mxu0 0.0
      %765 = vmatprep.subr.mxu0 0.0
      %766 = vmatpush1.xpose.msra.mxu0 0.0
      %767 = vmatprep.subr.mxu0 0.0
      %768 = vmatpush1.xpose.msra.mxu0 0.0
      %769 = vmatprep.subr.mxu0 0.0
      %770 = vmatpush1.xpose.msra.mxu0 0.0
      %771 = vmatprep.subr.mxu0 0.0
      %772 = vmatpush1.xpose.msra.mxu0 0.0
      %773 = vmatprep.subr.mxu0 0.0
      %774 = vmatpush1.xpose.msra.mxu0 0.0
      %775 = vmatprep.mubr.f32.mxu0 1.0
      %776 = vmatmul.mubr.f32.gmra.mrb[0].mxu0 1.0
      %v777 = vpop.f32.mrb[0].mxu0
      %v778 = vadd.f32 0.0, %v777
      %v779 = vpop.f32.mrb[0].mxu0
      %780 = vdwg.mxu0
      %781 = vmatprep.subr.mxu0 0.0
      %782 = vmatpush1.xpose.msra.mxu0 %v709
      %783 = vmatprep.subr.mxu0 0.0
      %784 = vmatpush1.xpose.msra.mxu0 0.0
      %785 = vmatprep.subr.mxu0 0.0
      %786 = vmatpush1.xpose.msra.mxu0 0.0
      %787 = vmatprep.subr.mxu0 0.0
      %788 = vmatpush1.xpose.msra.mxu0 0.0
      %789 = vmatprep.subr.mxu0 0.0
      %790 = vmatpush1.xpose.msra.mxu0 0.0
      %791 = vmatprep.subr.mxu0 0.0
      %792 = vmatpush1.xpose.msra.mxu0 0.0
      %793 = vmatprep.subr.mxu0 0.0
      %794 = vmatpush1.xpose.msra.mxu0 0.0
      %795 = vmatprep.subr.mxu0 0.0
      %796 = vmatpush1.xpose.msra.mxu0 0.0
      %797 = vmatprep.subr.mxu0 0.0
      %798 = vmatpush1.xpose.msra.mxu0 0.0
      %799 = vmatprep.subr.mxu0 0.0
      %800 = vmatpush1.xpose.msra.mxu0 0.0
      %801 = vmatprep.subr.mxu0 0.0
      %802 = vmatpush1.xpose.msra.mxu0 0.0
      %803 = vmatprep.subr.mxu0 0.0
      %804 = vmatpush1.xpose.msra.mxu0 0.0
      %805 = vmatprep.subr.mxu0 0.0
      %806 = vmatpush1.xpose.msra.mxu0 0.0
      %807 = vmatprep.subr.mxu0 0.0
      %808 = vmatpush1.xpose.msra.mxu0 0.0
      %809 = vmatprep.subr.mxu0 0.0
      %810 = vmatpush1.xpose.msra.mxu0 0.0
      %811 = vmatprep.subr.mxu0 0.0
      %812 = vmatpush1.xpose.msra.mxu0 0.0
      %813 = vmatprep.subr.mxu0 0.0
      %814 = vmatpush1.xpose.msra.mxu0 0.0
      %815 = vmatprep.subr.mxu0 0.0
      %816 = vmatpush1.xpose.msra.mxu0 0.0
      %817 = vmatprep.subr.mxu0 0.0
      %818 = vmatpush1.xpose.msra.mxu0 0.0
      %819 = vmatprep.subr.mxu0 0.0
      %820 = vmatpush1.xpose.msra.mxu0 0.0
      %821 = vmatprep.subr.mxu0 0.0
      %822 = vmatpush1.xpose.msra.mxu0 0.0
      %823 = vmatprep.subr.mxu0 0.0
      %824 = vmatpush1.xpose.msra.mxu0 0.0
      %825 = vmatprep.subr.mxu0 0.0
      %826 = vmatpush1.xpose.msra.mxu0 0.0
      %827 = vmatprep.subr.mxu0 0.0
      %828 = vmatpush1.xpose.msra.mxu0 0.0
      %829 = vmatprep.subr.mxu0 0.0
      %830 = vmatpush1.xpose.msra.mxu0 0.0
      %831 = vmatprep.subr.mxu0 0.0
      %832 = vmatpush1.xpose.msra.mxu0 0.0
      %833 = vmatprep.subr.mxu0 0.0
      %834 = vmatpush1.xpose.msra.mxu0 0.0
      %835 = vmatprep.subr.mxu0 0.0
      %836 = vmatpush1.xpose.msra.mxu0 0.0
      %837 = vmatprep.subr.mxu0 0.0
      %838 = vmatpush1.xpose.msra.mxu0 0.0
      %839 = vmatprep.subr.mxu0 0.0
      %840 = vmatpush1.xpose.msra.mxu0 0.0
      %841 = vmatprep.subr.mxu0 0.0
      %842 = vmatpush1.xpose.msra.mxu0 0.0
      %843 = vmatprep.subr.mxu0 0.0
      %844 = vmatpush1.xpose.msra.mxu0 0.0
      %845 = vmatprep.mubr.f32.mxu0 0.0
      %846 = vmatmul.mubr.f32.gmra.mrb[0].mxu0 %v707
      %v847 = vpop.f32.mrb[0].mxu0
      %v848 = vadd.f32 %v778, %v847
      %v849 = vpop.f32.mrb[0].mxu0
      %850 = vdwg.mxu0
      %v851 = vlaneseq
      %v852 = vshrl.u32 %v851, 7
      %v853 = vsub.s32 0, %v852
      %v854 = vrot.slane %v848, %v853
      %v855 = vadd.f32 %v688, %v854
      %v856 = vmul.f32 %v650, 2.0
      %v857 = vsub.f32 %v855, %v856
      %v858 = vmul.f32 %v857, 200.0
      %v859 = vadd.f32 %v858, 0.0
      %v860 = vld [vmem:[%s286] sm:$0x7]
      %v861 = vld [vmem:[%s290] sm:$0x3]
      %v862 = vld [vmem:[%s3] sm:$0xff]
      %v863 = vld [vmem:[%s3 + $0x8] sm:$0xff]
      %v864 = vld [vmem:[%s3 + $0x10] sm:$0xff]
      %v865 = vld [vmem:[%s3 + $0x18] sm:$0xff]
      %v866 = vld [vmem:[%s3 + $0x20] sm:$0xff]
      %v867 = vld [vmem:[%s3 + $0x28] sm:$0xff]
      %vm868 = vcmask 392192
      %v870 = vsel %vm868, %v860, 0
      %872 = vmatprep.subr.mxu0 0.0
      %873 = vmatpush1.msra.mxu0 %v862
      %874 = vmatprep.subr.mxu0 0.0
      %875 = vmatpush1.msra.mxu0 %v863
      %876 = vmatprep.subr.mxu0 0.0
      %877 = vmatpush1.msra.mxu0 %v864
      %878 = vmatprep.subr.mxu0 0.0
      %879 = vmatpush1.msra.mxu0 %v865
      %880 = vmatprep.subr.mxu0 0.0
      %881 = vmatpush1.msra.mxu0 %v866
      %882 = vmatprep.subr.mxu0 0.0
      %883 = vmatpush1.msra.mxu0 %v867
      %884 = vmatprep.subr.mxu0 0.0
      %885 = vmatpush1.msra.mxu0 0.0
      %886 = vmatprep.subr.mxu0 0.0
      %887 = vmatpush1.msra.mxu0 0.0
      %888 = vmatprep.subr.mxu0 0.0
      %889 = vmatpush1.msra.mxu0 0.0
      %890 = vmatprep.subr.mxu0 0.0
      %891 = vmatpush1.msra.mxu0 0.0
      %892 = vmatprep.subr.mxu0 0.0
      %893 = vmatpush1.msra.mxu0 0.0
      %894 = vmatprep.subr.mxu0 0.0
      %895 = vmatpush1.msra.mxu0 0.0
      %896 = vmatprep.subr.mxu0 0.0
      %897 = vmatpush1.msra.mxu0 0.0
      %898 = vmatprep.subr.mxu0 0.0
      %899 = vmatpush1.msra.mxu0 0.0
      %900 = vmatprep.subr.mxu0 0.0
      %901 = vmatpush1.msra.mxu0 0.0
      %902 = vmatprep.subr.mxu0 0.0
      %903 = vmatpush1.msra.mxu0 0.0
      %904 = vmatprep.subr.mxu0 0.0
      %905 = vmatpush1.msra.mxu0 0.0
      %906 = vmatprep.subr.mxu0 0.0
      %907 = vmatpush1.msra.mxu0 0.0
      %908 = vmatprep.subr.mxu0 0.0
      %909 = vmatpush1.msra.mxu0 0.0
      %910 = vmatprep.subr.mxu0 0.0
      %911 = vmatpush1.msra.mxu0 0.0
      %912 = vmatprep.subr.mxu0 0.0
      %913 = vmatpush1.msra.mxu0 0.0
      %914 = vmatprep.subr.mxu0 0.0
      %915 = vmatpush1.msra.mxu0 0.0
      %916 = vmatprep.subr.mxu0 0.0
      %917 = vmatpush1.msra.mxu0 0.0
      %918 = vmatprep.subr.mxu0 0.0
      %919 = vmatpush1.msra.mxu0 0.0
      %920 = vmatprep.subr.mxu0 0.0
      %921 = vmatpush1.msra.mxu0 0.0
      %922 = vmatprep.subr.mxu0 0.0
      %923 = vmatpush1.msra.mxu0 0.0
      %924 = vmatprep.subr.mxu0 0.0
      %925 = vmatpush1.msra.mxu0 0.0
      %926 = vmatprep.subr.mxu0 0.0
      %927 = vmatpush1.msra.mxu0 0.0
      %928 = vmatprep.subr.mxu0 0.0
      %929 = vmatpush1.msra.mxu0 0.0
      %930 = vmatprep.subr.mxu0 0.0
      %931 = vmatpush1.msra.mxu0 0.0
      %932 = vmatprep.subr.mxu0 0.0
      %933 = vmatpush1.msra.mxu0 0.0
      %934 = vmatprep.subr.mxu0 0.0
      %935 = vmatpush1.msra.mxu0 0.0
      %936 = vmatprep.mubr.f32.mxu0 0.0
      %937 = vmatmul.mubr.f32.gmra.mrb[0].mxu0 %v870
      %v938 = vpop.f32.mrb[0].mxu0
      %v939 = vadd.f32 0.0, %v938
      %v940 = vpop.f32.mrb[0].mxu0
      %941 = vdwg.mxu0
      %vm942 = vcmask 261120
      %v944 = vsel %vm942, %v939, 0
      %v947 = vsel %vm942, %v861, 0
      %949 = vmatprep.subr.mxu0 0.0
      %950 = vmatpush1.xpose.msra.mxu0 %v947
      %951 = vmatprep.subr.mxu0 0.0
      %952 = vmatpush1.xpose.msra.mxu0 0.0
      %953 = vmatprep.subr.mxu0 0.0
      %954 = vmatpush1.xpose.msra.mxu0 0.0
      %955 = vmatprep.subr.mxu0 0.0
      %956 = vmatpush1.xpose.msra.mxu0 0.0
      %957 = vmatprep.subr.mxu0 0.0
      %958 = vmatpush1.xpose.msra.mxu0 0.0
      %959 = vmatprep.subr.mxu0 0.0
      %960 = vmatpush1.xpose.msra.mxu0 0.0
      %961 = vmatprep.subr.mxu0 0.0
      %962 = vmatpush1.xpose.msra.mxu0 0.0
      %963 = vmatprep.subr.mxu0 0.0
      %964 = vmatpush1.xpose.msra.mxu0 0.0
      %965 = vmatprep.subr.mxu0 0.0
      %966 = vmatpush1.xpose.msra.mxu0 0.0
      %967 = vmatprep.subr.mxu0 0.0
      %968 = vmatpush1.xpose.msra.mxu0 0.0
      %969 = vmatprep.subr.mxu0 0.0
      %970 = vmatpush1.xpose.msra.mxu0 0.0
      %971 = vmatprep.subr.mxu0 0.0
      %972 = vmatpush1.xpose.msra.mxu0 0.0
      %973 = vmatprep.subr.mxu0 0.0
      %974 = vmatpush1.xpose.msra.mxu0 0.0
      %975 = vmatprep.subr.mxu0 0.0
      %976 = vmatpush1.xpose.msra.mxu0 0.0
      %977 = vmatprep.subr.mxu0 0.0
      %978 = vmatpush1.xpose.msra.mxu0 0.0
      %979 = vmatprep.subr.mxu0 0.0
      %980 = vmatpush1.xpose.msra.mxu0 0.0
      %981 = vmatprep.subr.mxu0 0.0
      %982 = vmatpush1.xpose.msra.mxu0 0.0
      %983 = vmatprep.subr.mxu0 0.0
      %984 = vmatpush1.xpose.msra.mxu0 0.0
      %985 = vmatprep.subr.mxu0 0.0
      %986 = vmatpush1.xpose.msra.mxu0 0.0
      %987 = vmatprep.subr.mxu0 0.0
      %988 = vmatpush1.xpose.msra.mxu0 0.0
      %989 = vmatprep.subr.mxu0 0.0
      %990 = vmatpush1.xpose.msra.mxu0 0.0
      %991 = vmatprep.subr.mxu0 0.0
      %992 = vmatpush1.xpose.msra.mxu0 0.0
      %993 = vmatprep.subr.mxu0 0.0
      %994 = vmatpush1.xpose.msra.mxu0 0.0
      %995 = vmatprep.subr.mxu0 0.0
      %996 = vmatpush1.xpose.msra.mxu0 0.0
      %997 = vmatprep.subr.mxu0 0.0
      %998 = vmatpush1.xpose.msra.mxu0 0.0
      %999 = vmatprep.subr.mxu0 0.0
      %1000 = vmatpush1.xpose.msra.mxu0 0.0
      %1001 = vmatprep.subr.mxu0 0.0
      %1002 = vmatpush1.xpose.msra.mxu0 0.0
      %1003 = vmatprep.subr.mxu0 0.0
      %1004 = vmatpush1.xpose.msra.mxu0 0.0
      %1005 = vmatprep.subr.mxu0 0.0
      %1006 = vmatpush1.xpose.msra.mxu0 0.0
      %1007 = vmatprep.subr.mxu0 0.0
      %1008 = vmatpush1.xpose.msra.mxu0 0.0
      %1009 = vmatprep.subr.mxu0 0.0
      %1010 = vmatpush1.xpose.msra.mxu0 0.0
      %1011 = vmatprep.subr.mxu0 0.0
      %1012 = vmatpush1.xpose.msra.mxu0 0.0
      %1013 = vmatprep.mubr.f32.mxu0 0.0
      %1014 = vmatmul.mubr.f32.gmra.mrb[0].mxu0 %v944
      %v1015 = vpop.f32.mrb[0].mxu0
      %v1016 = vadd.f32 0.0, %v1015
      %v1017 = vpop.f32.mrb[0].mxu0
      %1018 = vdwg.mxu0
      %v1019 = vmul.f32 %v939, %v939
      %vm1020 = vcmask 256000
      %v1021 = vsel %vm1020, %v1019, 0.0
      %1022 = vadd.xlane.f32.xlu0 %v1021
      %v1023 = vpop.xlane.xlu0 %1022
      %v1024 = vmul.f32 %v861, %v861
      %v1025 = vsel %vm942, 1.0, 0
      %v1028 = vsel %vm942, %v1024, 0
      %1030 = vmatprep.subr.mxu0 0.0
      %1031 = vmatpush1.xpose.msra.mxu0 %v1028
      %1032 = vmatprep.subr.mxu0 0.0
      %1033 = vmatpush1.xpose.msra.mxu0 0.0
      %1034 = vmatprep.subr.mxu0 0.0
      %1035 = vmatpush1.xpose.msra.mxu0 0.0
      %1036 = vmatprep.subr.mxu0 0.0
      %1037 = vmatpush1.xpose.msra.mxu0 0.0
      %1038 = vmatprep.subr.mxu0 0.0
      %1039 = vmatpush1.xpose.msra.mxu0 0.0
      %1040 = vmatprep.subr.mxu0 0.0
      %1041 = vmatpush1.xpose.msra.mxu0 0.0
      %1042 = vmatprep.subr.mxu0 0.0
      %1043 = vmatpush1.xpose.msra.mxu0 0.0
      %1044 = vmatprep.subr.mxu0 0.0
      %1045 = vmatpush1.xpose.msra.mxu0 0.0
      %1046 = vmatprep.subr.mxu0 0.0
      %1047 = vmatpush1.xpose.msra.mxu0 0.0
      %1048 = vmatprep.subr.mxu0 0.0
      %1049 = vmatpush1.xpose.msra.mxu0 0.0
      %1050 = vmatprep.subr.mxu0 0.0
      %1051 = vmatpush1.xpose.msra.mxu0 0.0
      %1052 = vmatprep.subr.mxu0 0.0
      %1053 = vmatpush1.xpose.msra.mxu0 0.0
      %1054 = vmatprep.subr.mxu0 0.0
      %1055 = vmatpush1.xpose.msra.mxu0 0.0
      %1056 = vmatprep.subr.mxu0 0.0
      %1057 = vmatpush1.xpose.msra.mxu0 0.0
      %1058 = vmatprep.subr.mxu0 0.0
      %1059 = vmatpush1.xpose.msra.mxu0 0.0
      %1060 = vmatprep.subr.mxu0 0.0
      %1061 = vmatpush1.xpose.msra.mxu0 0.0
      %1062 = vmatprep.subr.mxu0 0.0
      %1063 = vmatpush1.xpose.msra.mxu0 0.0
      %1064 = vmatprep.subr.mxu0 0.0
      %1065 = vmatpush1.xpose.msra.mxu0 0.0
      %1066 = vmatprep.subr.mxu0 0.0
      %1067 = vmatpush1.xpose.msra.mxu0 0.0
      %1068 = vmatprep.subr.mxu0 0.0
      %1069 = vmatpush1.xpose.msra.mxu0 0.0
      %1070 = vmatprep.subr.mxu0 0.0
      %1071 = vmatpush1.xpose.msra.mxu0 0.0
      %1072 = vmatprep.subr.mxu0 0.0
      %1073 = vmatpush1.xpose.msra.mxu0 0.0
      %1074 = vmatprep.subr.mxu0 0.0
      %1075 = vmatpush1.xpose.msra.mxu0 0.0
      %1076 = vmatprep.subr.mxu0 0.0
      %1077 = vmatpush1.xpose.msra.mxu0 0.0
      %1078 = vmatprep.subr.mxu0 0.0
      %1079 = vmatpush1.xpose.msra.mxu0 0.0
      %1080 = vmatprep.subr.mxu0 0.0
      %1081 = vmatpush1.xpose.msra.mxu0 0.0
      %1082 = vmatprep.subr.mxu0 0.0
      %1083 = vmatpush1.xpose.msra.mxu0 0.0
      %1084 = vmatprep.subr.mxu0 0.0
      %1085 = vmatpush1.xpose.msra.mxu0 0.0
      %1086 = vmatprep.subr.mxu0 0.0
      %1087 = vmatpush1.xpose.msra.mxu0 0.0
      %1088 = vmatprep.subr.mxu0 0.0
      %1089 = vmatpush1.xpose.msra.mxu0 0.0
      %1090 = vmatprep.subr.mxu0 0.0
      %1091 = vmatpush1.xpose.msra.mxu0 0.0
      %1092 = vmatprep.subr.mxu0 0.0
      %1093 = vmatpush1.xpose.msra.mxu0 0.0
      %1094 = vmatprep.mubr.f32.mxu0 0.0
      %1095 = vmatmul.mubr.f32.gmra.mrb[0].mxu0 %v1025
      %v1096 = vpop.f32.mrb[0].mxu0
      %v1097 = vadd.f32 0.0, %v1096
      %v1098 = vpop.f32.mrb[0].mxu0
      %1099 = vdwg.mxu0
      %v1100 = vlaneseq
      %v1101 = vshrl.u32 %v1100, 7
      %v1102 = vsub.s32 0, %v1101
      %v1103 = vrot.slane %v1097, %v1102
      %v1104 = vadd.f32 %v1023, %v1103
      %v1105 = vmul.f32 %v1016, 2.0
      %v1106 = vsub.f32 %v1104, %v1105
      %v1107 = vadd.f32 %v859, %v1106
      %v1108 = vld [vmem:[%s6] sm:$0x7]
      %v1109 = vadd.f32 %v1108, %v1107
      %vm1110 = vcmask 10240
      %1111 = vst.msk [vmem:[%s6] sm:$0x7] %vm1110, %v1109
      %p1112 = scmp.eq.s32.totalorder %s17, 1
      // Predicated region
      $region49: #{tpu_custom_call.1} parent=43 // pred_check
        %p1113 = pneg %p1112
      $region50: #{tpu_custom_call.1} parent=43 // pred_check_branch
        %1115 = sbr.rel (%p1113) target = $region52
      $region51: #{tpu_custom_call.1} parent=43 // pred_region
        %v1116 = vld [vmem:[%s5] sm:$0x7]
        %v1117 = vld [vmem:[%s6] sm:$0x7]
        %v1118 = vmul.f32 %v1116, %v1117
        %1119 = vst.msk [vmem:[%s6] sm:$0x7] %vm1110, %v1118
      $region52: #{tpu_custom_call.1} parent=43 // pred_fallthru
        _
      // Predicated region
      $region53: #{tpu_custom_call.1} parent=43 // pred_check
        %p1120 = pneg %p176
      $region54: #{tpu_custom_call.1} parent=43 // pred_check_branch
        %1122 = sbr.rel (%p1120) target = $region56
      $region55: #{tpu_custom_call.1} parent=43 // pred_region
        _
      $region56: #{tpu_custom_call.1} parent=43 // pred_fallthru
        _
      // Predicated region
      $region57: #{tpu_custom_call.1} parent=43 // pred_check
        %p1123 = pneg %p176
      $region58: #{tpu_custom_call.1} parent=43 // pred_check_branch
        %1125 = sbr.rel (%p1123) target = $region60
      $region59: #{tpu_custom_call.1} parent=43 // pred_region
        _
      $region60: #{tpu_custom_call.1} parent=43 // pred_fallthru
        _
    $region44: #{tpu_custom_call.1} parent=5 // pred_fallthru
      _
    %p1126 = scmp.le.s32.totalorder 2, %s12
    // Predicated region
    $region61: #{tpu_custom_call.1} parent=5 // pred_check
      %p1127 = pneg %p1126
    $region62: #{tpu_custom_call.1} parent=5 // pred_check_branch
      %1129 = sbr.rel (%p1127) target = $region64
    $region63: #{tpu_custom_call.1} parent=5 // pred_region
      %s1130 = ssub.s32 %s12, 2
    $region64: #{tpu_custom_call.1} parent=5 // pred_fallthru
      _
  $region6: #{tpu_custom_call.1} parent=0 // loop_footer
    %s16 = sadd.s32 1, %s12
  $region7: #{tpu_custom_call.1} parent=0 // loop_footer_branch
    %11 = sbr.rel target = $region3
  $region8: #{tpu_custom_call.1} parent=0 // loop_exit
    _

</llo_original>
